<compile_context>
chip_gen: v5e
topology: v5e:2x2
jax: 0.10.0
libtpu: 0.0.40
codegen_flags: <defaults>
</compile_context>

<pallas_src>
import jax
import jax.numpy as jnp
from jax.experimental import pallas as pl
from jax.experimental.pallas import tpu as pltpu

ZETA = 1.1
BETA = 0.2


def _sigmoid(x):
    # sigmoid(x) == 0.5 * (1 + tanh(x / 2)); single EUP transcendental.
    return 0.5 * (jnp.tanh(0.5 * x) + 1.0)


def ungs_tile_kernel(s_ij_ref, s_ji_ref, econf_row_ref, econf_col_ref,
                     l_row_ref, l_col_ref, out_ref):
    econf_j = econf_row_ref[...]   # (1, T)  exp(-confidence[j])
    econf_i = econf_col_ref[...]   # (T, 1)  exp(-confidence[i])
    l_j = l_row_ref[...]           # (1, T)  l[j]
    l_i = l_col_ref[...]           # (T, 1)  l[i]

    # adj[i, j] = sigmoid(s[i, j]) * (act(exp(-conf[j]) - l[i]) - l[j])
    x1 = econf_j - l_i                                        # (T, T)
    act1 = jnp.where(x1 > 0.0, ZETA * _sigmoid(x1), BETA) - l_j
    adj_ij = _sigmoid(s_ij_ref[...]) * act1

    # adj[j, i], laid out on the (i-row, j-col) tile.
    # s_ji_ref holds the (bj, bi) block of s, i.e. s[j, i] at local [j, i];
    # transposing the tile puts s[j, i] at local [i, j] (cheap XLU op).
    x2 = econf_i - l_j                                        # (T, T)
    act2 = jnp.where(x2 > 0.0, ZETA * _sigmoid(x2), BETA) - l_i
    adj_ji_t = _sigmoid(s_ji_ref[...].T) * act2

    out_ref[...] = adj_ij + adj_ji_t


def _pick_tile(n):
    for t in (512, 256, 128):
        if n % t == 0:
            return t
    return n  # awkward / tiny N: single full-array block


def ungs_forward(s, confidence, l, *, tile=None):
    n = s.shape[0]
    t = tile if tile is not None else _pick_tile(n)
    assert n % t == 0, "tile must divide num_nodes"

    s = s.astype(jnp.float32)
    econf = jnp.exp(-confidence).astype(jnp.float32)   # hoisted out of kernel
    econf_row = econf.reshape(1, n)
    econf_col = econf.reshape(n, 1)
    l = l.astype(jnp.float32)
    l_row = l.reshape(1, n)
    l_col = l.reshape(n, 1)

    grid = (n // t, n // t)
    return pl.pallas_call(
        ungs_tile_kernel,
        out_shape=jax.ShapeDtypeStruct((n, n), jnp.float32),
        grid=grid,
        in_specs=[
            pl.BlockSpec((t, t), lambda i, j: (i, j)),   # s[i, j] tile
            pl.BlockSpec((t, t), lambda i, j: (j, i)),   # s[j, i] tile (swapped)
            pl.BlockSpec((1, t), lambda i, j: (0, j)),   # exp(-conf[j]) row
            pl.BlockSpec((t, 1), lambda i, j: (i, 0)),   # exp(-conf[i]) col
            pl.BlockSpec((1, t), lambda i, j: (0, j)),   # l[j] row
            pl.BlockSpec((t, 1), lambda i, j: (i, 0)),   # l[i] col
        ],
        out_specs=pl.BlockSpec((t, t), lambda i, j: (i, j)),
        compiler_params=pltpu.CompilerParams(
            dimension_semantics=("parallel", "parallel")),
    )(s, s, econf_row, econf_col, l_row, l_col)


def ungs_reference(s, confidence, l):
    # Pure-JAX reference mirroring the PyTorch forward.
    x = jnp.exp(-confidence)[None, :] - l[:, None]
    mask = (x > 0).astype(jnp.float32)
    act = mask * ZETA * jax.nn.sigmoid(x) + (1.0 - mask) * BETA - l[None, :]
    adj = jax.nn.sigmoid(s) * act
    return adj + adj.T


if __name__ == "__main__":
    key = jax.random.PRNGKey(0)
    k_s, k_c, k_l = jax.random.split(key, 3)

    N = 256  # num_nodes (small; 128-tiles give a 2x2 grid to exercise tiling)
    s = jax.random.normal(k_s, (N, N), dtype=jnp.float32)
    confidence = jax.random.uniform(k_c, (N,), dtype=jnp.float32)

    # 1) Module init: l = 0.5 everywhere, explicit 128 tile -> (2, 2) grid.
    l_const = jnp.full((N,), 0.5, dtype=jnp.float32)
    out = jax.block_until_ready(ungs_forward(s, confidence, l_const, tile=128))
    ref = ungs_reference(s, confidence, l_const)
    assert out.shape == (N, N)
    assert jnp.allclose(out, ref, atol=1e-4, rtol=1e-4), "mismatch (const l)"

    # 2) Non-constant l (catches swapped row/column broadcast bugs), auto tile.
    l_rand = jax.random.uniform(k_l, (N,), dtype=jnp.float32)
    out2 = jax.block_until_ready(ungs_forward(s, confidence, l_rand))
    ref2 = ungs_reference(s, confidence, l_rand)
    assert jnp.allclose(out2, ref2, atol=1e-4, rtol=1e-4), "mismatch (rand l)"

    print("KERNEL_OK")
</pallas_src>

<mosaic_0001>
module attributes {stable_mosaic.version = 11 : i64} {
  func.func @ungs_tile_kernel(%arg0: i32, %arg1: i32, %arg2: memref<128x128xf32, #tpu.memory_space<vmem>>, %arg3: memref<128x128xf32, #tpu.memory_space<vmem>>, %arg4: memref<1x128xf32, #tpu.memory_space<vmem>>, %arg5: memref<128x1xf32, #tpu.memory_space<vmem>>, %arg6: memref<1x128xf32, #tpu.memory_space<vmem>>, %arg7: memref<128x1xf32, #tpu.memory_space<vmem>>, %arg8: memref<128x128xf32, #tpu.memory_space<vmem>>) attributes {dimension_semantics = [#tpu.dimension_semantics<parallel>, #tpu.dimension_semantics<parallel>], iteration_bounds = array<i64: 2, 2>, scalar_prefetch = 0 : i64, scratch_operands = 0 : i64, tpu.core_type = #tpu.core_type<tc>, window_params = [{transform_indices = @transform_0, window_bounds = array<i64: 128, 128>}, {transform_indices = @transform_1, window_bounds = array<i64: 128, 128>}, {transform_indices = @transform_2, window_bounds = array<i64: 1, 128>}, {transform_indices = @transform_3, window_bounds = array<i64: 128, 1>}, {transform_indices = @transform_4, window_bounds = array<i64: 1, 128>}, {transform_indices = @transform_5, window_bounds = array<i64: 128, 1>}, {transform_indices = @transform_6, window_bounds = array<i64: 128, 128>}]} {
    %c0 = arith.constant 0 : index
    %c0_0 = arith.constant 0 : index
    %0 = vector.load %arg4[%c0, %c0_0] : memref<1x128xf32, #tpu.memory_space<vmem>>, vector<1x128xf32>
    %c0_1 = arith.constant 0 : index
    %c0_2 = arith.constant 0 : index
    %1 = vector.load %arg5[%c0_1, %c0_2] : memref<128x1xf32, #tpu.memory_space<vmem>>, vector<128x1xf32>
    %c0_3 = arith.constant 0 : index
    %c0_4 = arith.constant 0 : index
    %2 = vector.load %arg6[%c0_3, %c0_4] : memref<1x128xf32, #tpu.memory_space<vmem>>, vector<1x128xf32>
    %c0_5 = arith.constant 0 : index
    %c0_6 = arith.constant 0 : index
    %3 = vector.load %arg7[%c0_5, %c0_6] : memref<128x1xf32, #tpu.memory_space<vmem>>, vector<128x1xf32>
    %4 = vector.broadcast %0 : vector<1x128xf32> to vector<128x128xf32>
    %5 = vector.broadcast %3 : vector<128x1xf32> to vector<128x128xf32>
    %6 = arith.subf %4, %5 : vector<128x128xf32>
    %cst = arith.constant 0.000000e+00 : f32
    %7 = vector.broadcast %cst : f32 to vector<128x128xf32>
    %8 = arith.cmpf ogt, %6, %7 : vector<128x128xf32>
    %cst_7 = arith.constant 5.000000e-01 : f32
    %9 = vector.broadcast %cst_7 : f32 to vector<128x128xf32>
    %10 = arith.mulf %9, %6 : vector<128x128xf32>
    %11 = math.tanh %10 : vector<128x128xf32>
    %cst_8 = arith.constant 1.000000e+00 : f32
    %12 = vector.broadcast %cst_8 : f32 to vector<128x128xf32>
    %13 = arith.addf %11, %12 : vector<128x128xf32>
    %cst_9 = arith.constant 5.000000e-01 : f32
    %14 = vector.broadcast %cst_9 : f32 to vector<128x128xf32>
    %15 = arith.mulf %14, %13 : vector<128x128xf32>
    %cst_10 = arith.constant 1.100000e+00 : f32
    %16 = vector.broadcast %cst_10 : f32 to vector<128x128xf32>
    %17 = arith.mulf %16, %15 : vector<128x128xf32>
    %cst_11 = arith.constant 2.000000e-01 : f32
    %18 = vector.broadcast %cst_11 : f32 to vector<128x128xf32>
    %19 = arith.select %8, %17, %18 : vector<128x128xi1>, vector<128x128xf32>
    %20 = vector.broadcast %2 : vector<1x128xf32> to vector<128x128xf32>
    %21 = arith.subf %19, %20 : vector<128x128xf32>
    %c0_12 = arith.constant 0 : index
    %c0_13 = arith.constant 0 : index
    %22 = vector.load %arg2[%c0_12, %c0_13] : memref<128x128xf32, #tpu.memory_space<vmem>>, vector<128x128xf32>
    %cst_14 = arith.constant 5.000000e-01 : f32
    %23 = vector.broadcast %cst_14 : f32 to vector<128x128xf32>
    %24 = arith.mulf %23, %22 : vector<128x128xf32>
    %25 = math.tanh %24 : vector<128x128xf32>
    %cst_15 = arith.constant 1.000000e+00 : f32
    %26 = vector.broadcast %cst_15 : f32 to vector<128x128xf32>
    %27 = arith.addf %25, %26 : vector<128x128xf32>
    %cst_16 = arith.constant 5.000000e-01 : f32
    %28 = vector.broadcast %cst_16 : f32 to vector<128x128xf32>
    %29 = arith.mulf %28, %27 : vector<128x128xf32>
    %30 = arith.mulf %29, %21 : vector<128x128xf32>
    %31 = vector.broadcast %1 : vector<128x1xf32> to vector<128x128xf32>
    %32 = vector.broadcast %2 : vector<1x128xf32> to vector<128x128xf32>
    %33 = arith.subf %31, %32 : vector<128x128xf32>
    %cst_17 = arith.constant 0.000000e+00 : f32
    %34 = vector.broadcast %cst_17 : f32 to vector<128x128xf32>
    %35 = arith.cmpf ogt, %33, %34 : vector<128x128xf32>
    %cst_18 = arith.constant 5.000000e-01 : f32
    %36 = vector.broadcast %cst_18 : f32 to vector<128x128xf32>
    %37 = arith.mulf %36, %33 : vector<128x128xf32>
    %38 = math.tanh %37 : vector<128x128xf32>
    %cst_19 = arith.constant 1.000000e+00 : f32
    %39 = vector.broadcast %cst_19 : f32 to vector<128x128xf32>
    %40 = arith.addf %38, %39 : vector<128x128xf32>
    %cst_20 = arith.constant 5.000000e-01 : f32
    %41 = vector.broadcast %cst_20 : f32 to vector<128x128xf32>
    %42 = arith.mulf %41, %40 : vector<128x128xf32>
    %cst_21 = arith.constant 1.100000e+00 : f32
    %43 = vector.broadcast %cst_21 : f32 to vector<128x128xf32>
    %44 = arith.mulf %43, %42 : vector<128x128xf32>
    %cst_22 = arith.constant 2.000000e-01 : f32
    %45 = vector.broadcast %cst_22 : f32 to vector<128x128xf32>
    %46 = arith.select %35, %44, %45 : vector<128x128xi1>, vector<128x128xf32>
    %47 = vector.broadcast %3 : vector<128x1xf32> to vector<128x128xf32>
    %48 = arith.subf %46, %47 : vector<128x128xf32>
    %c0_23 = arith.constant 0 : index
    %c0_24 = arith.constant 0 : index
    %49 = vector.load %arg3[%c0_23, %c0_24] : memref<128x128xf32, #tpu.memory_space<vmem>>, vector<128x128xf32>
    %50 = tpu.transpose %49, [1, 0] : vector<128x128xf32> -> vector<128x128xf32>
    %cst_25 = arith.constant 5.000000e-01 : f32
    %51 = vector.broadcast %cst_25 : f32 to vector<128x128xf32>
    %52 = arith.mulf %51, %50 : vector<128x128xf32>
    %53 = math.tanh %52 : vector<128x128xf32>
    %cst_26 = arith.constant 1.000000e+00 : f32
    %54 = vector.broadcast %cst_26 : f32 to vector<128x128xf32>
    %55 = arith.addf %53, %54 : vector<128x128xf32>
    %cst_27 = arith.constant 5.000000e-01 : f32
    %56 = vector.broadcast %cst_27 : f32 to vector<128x128xf32>
    %57 = arith.mulf %56, %55 : vector<128x128xf32>
    %58 = arith.mulf %57, %48 : vector<128x128xf32>
    %59 = arith.addf %30, %58 : vector<128x128xf32>
    %c0_28 = arith.constant 0 : index
    %c0_29 = arith.constant 0 : index
    %60 = vector.load %arg8[%c0_28, %c0_29] : memref<128x128xf32, #tpu.memory_space<vmem>>, vector<128x128xf32>
    tpu.vector_store %arg8[%c0_28, %c0_29], %59 {strides = array<i32>} : memref<128x128xf32, #tpu.memory_space<vmem>>, vector<128x128xf32>,
    return
  }
  func.func @transform_0(%arg0: i32, %arg1: i32) -> (i32, i32) {
    %c0_i32 = arith.constant 0 : i32
    return %arg0, %arg1 : i32, i32
  }
  func.func @transform_1(%arg0: i32, %arg1: i32) -> (i32, i32) {
    %c0_i32 = arith.constant 0 : i32
    return %arg1, %arg0 : i32, i32
  }
  func.func @transform_2(%arg0: i32, %arg1: i32) -> (i32, i32) {
    %c0_i32 = arith.constant 0 : i32
    %c0_i32_0 = arith.constant 0 : i32
    return %c0_i32, %arg1 : i32, i32
  }
  func.func @transform_3(%arg0: i32, %arg1: i32) -> (i32, i32) {
    %c0_i32 = arith.constant 0 : i32
    %c0_i32_0 = arith.constant 0 : i32
    return %arg0, %c0_i32 : i32, i32
  }
  func.func @transform_4(%arg0: i32, %arg1: i32) -> (i32, i32) {
    %c0_i32 = arith.constant 0 : i32
    %c0_i32_0 = arith.constant 0 : i32
    return %c0_i32, %arg1 : i32, i32
  }
  func.func @transform_5(%arg0: i32, %arg1: i32) -> (i32, i32) {
    %c0_i32 = arith.constant 0 : i32
    %c0_i32_0 = arith.constant 0 : i32
    return %arg0, %c0_i32 : i32, i32
  }
  func.func @transform_6(%arg0: i32, %arg1: i32) -> (i32, i32) {
    %c0_i32 = arith.constant 0 : i32
    return %arg0, %arg1 : i32, i32
  }
}

</mosaic_0001>

<llo_original>
// kernel: tpu_custom_call.1
$region0: #{tpu_custom_call.1}
  #allocation0 [shape = 'u32[]', space=smem, size = 0x4, offset = 0x4, fixed_abs, tag = 'smem constant byte address 0x4 - core index']
  #allocation1 [shape = 'u32[72,128]{1,0:T(1,128)}', space=vmem, size = 0x9000, scoped, tag = 'internal scratch']
  %s0 = inlined_call_operand.vmem [shape: f32[256,256], index: 0, kind: input, shape index: {}]
  %s1 = inlined_call_operand.hbm [shape: f32[256,256], index: 1, kind: input, shape index: {}]
  %s2 = inlined_call_operand.vmem [shape: f32[1,256], index: 2, kind: input, shape index: {}]
  %s3 = inlined_call_operand.vmem [shape: f32[256,1], index: 3, kind: input, shape index: {}]
  %s4 = inlined_call_operand.hbm [shape: f32[1,256], index: 4, kind: input, shape index: {}]
  %s5 = inlined_call_operand.vmem [shape: f32[256,1], index: 5, kind: input, shape index: {}]
  %s6 = inlined_call_operand.hbm [shape: f32[256,256], index: 6, kind: output, shape index: {}]
  %s7 = sld [smem:[#allocation0]]
  $region103: #{tpu_custom_call.1} parent=0
    _
  %s9 = ssub.s32 1, %s7
  %s10 = scalar_select 0, %s9, %s7
  $region1: #{tpu_custom_call.1} parent=0
    #allocation2 [shape = 'u8[131072]{0}', space=vmem, size = 0x20000, scoped, tag = 'input window, operand 0']
    #allocation3 [shape = 'u8[131072]{0}', space=vmem, size = 0x20000, scoped, tag = 'input window, operand 1']
    #allocation4 [shape = 's32[2]{0}', space=sflag, size = 0x8, scoped, tag = 'scoped memory for tpu_custom_call.1']
    #allocation5 [shape = 's32[2]{0}', space=sflag, size = 0x8, scoped, tag = 'scoped memory for tpu_custom_call.1']
    #allocation6 [shape = 'u8[1024]{0}', space=vmem, size = 0x400, scoped, tag = 'input window, operand 4']
    #allocation7 [shape = 's32[2]{0}', space=sflag, size = 0x8, scoped, tag = 'scoped memory for tpu_custom_call.1']
    #allocation8 [shape = 'u8[131072]{0}', space=vmem, size = 0x20000, scoped, tag = 'output window, operand 0']
    %11 = vsyncpa [#allocation4], 0
    %s12 = scalar_lea.sflag [#allocation4], 1
    %13 = vsyncpa %s12, 0
    %14 = vsyncpa [#allocation7], 0
    %s15 = scalar_lea.sflag [#allocation7], 1
    %16 = vsyncpa %s15, 0
    %17 = vsyncpa [#allocation5], 0
    %s18 = scalar_lea.sflag [#allocation5], 1
    %19 = vsyncpa %s18, 0
    loop: start=0, step=1, limit=6
    $region2: #{tpu_custom_call.1} parent=1 // loop_pre_header
      _
    $region3: #{tpu_custom_call.1} parent=1 // loop_header
      %s21 = sphi 0, %s25
      %p22 = scmp.ge.s32.totalorder %s21, 6
      %s28 = sphi 0, %s40
      %s29 = sphi 0, %s36
      %s30 = sphi 0, %s28
      %s31 = sphi 0, %s29
      %s32 = sphi 0, %s30
      %s33 = sphi 0, %s31
      %s45 = sphi 0, %s47
      %s48 = sphi 0, %s45
      %s49 = sphi 0, %s48
      %s65 = sphi 0, %s49
      %s73 = sphi 0, %s75
      %s76 = sphi 0, %s73
      %s77 = sphi 0, %s76
      %s93 = sphi 0, %s77
      %s99 = sphi 0, %s101
      %s102 = sphi 0, %s99
      %s103 = sphi 0, %s102
      %s119 = sphi 0, %s103
      %s125 = sphi 0, %s127
      %s128 = sphi 0, %s125
      %s129 = sphi 0, %s128
      %s145 = sphi 0, %s129
      %s151 = sphi 0, %s153
      %s154 = sphi 0, %s151
      %s155 = sphi 0, %s154
      %s171 = sphi 0, %s155
      %s177 = sphi 0, %s179
      %s180 = sphi 0, %s177
      %s181 = sphi 0, %s180
      %s197 = sphi 0, %s181
      %s205 = sphi 0, %s207
      %s208 = sphi 0, %s205
      %s209 = sphi 0, %s208
      %s225 = sphi 0, %s209
    $region4: #{tpu_custom_call.1} parent=1 // loop_header_branch
      %24 = sbr.rel (%p22) target = $region8
    $region5: #{tpu_custom_call.1} parent=1 // loop_body
      %s26 = ssub.s32 %s21, 1
      %s27 = ssub.s32 %s21, 2
      %s34 = sadd.s32 1, %s29
      %p35 = scmp.ge.s32.totalorder %s34, 2
      %s36 = scalar_select %p35, 0, %s34
      %s37 = sadd.s32 1, %s28
      %s38 = scalar_select %p35, %s37, %s28
      %p39 = scmp.ge.s32.totalorder %s38, 2
      %s40 = scalar_select %p39, 0, %s38
      %s41 = ssub.s32 %s28, %s40
      %s42 = ssub.s32 %s29, %s36
      %s43 = sor.u32 %s41, %s42
      %p44 = scmp.eq.s32.totalorder %s43, 0
      %s46 = sadd.s32 %s45, 1
      %s47 = scalar_select %p44, %s45, %s46
      %p50 = pneg %p44
      %p51 = scmp.eq.s32.totalorder %s21, 3
      %p52 = por %p50, %p51
      %p53 = scmp.ne.s32.totalorder %s45, %s48
      %p54 = scmp.eq.s32.totalorder %s21, 0
      %p55 = por %p53, %p54
      %p56 = scmp.ne.s32.totalorder %s45, %s48
      %p57 = scmp.eq.s32.totalorder %s26, 3
      %p58 = por %p56, %p57
      %p59 = scmp.ne.s32.totalorder %s48, %s49
      %p60 = scmp.eq.s32.totalorder %s26, 0
      %p61 = por %p59, %p60
      %p62 = scmp.ne.s32.totalorder %s48, %s49
      %p63 = scmp.eq.s32.totalorder %s27, 3
      %p64 = por %p62, %p63
      %p66 = scmp.ne.s32.totalorder %s49, %s65
      %p67 = scmp.eq.s32.totalorder %s27, 0
      %p68 = por %p66, %p67
      %s69 = ssub.s32 %s29, %s36
      %s70 = ssub.s32 %s28, %s40
      %s71 = sor.u32 %s69, %s70
      %p72 = scmp.eq.s32.totalorder %s71, 0
      %s74 = sadd.s32 %s73, 1
      %s75 = scalar_select %p72, %s73, %s74
      %p78 = pneg %p72
      %p79 = scmp.eq.s32.totalorder %s21, 3
      %p80 = por %p78, %p79
      %p81 = scmp.ne.s32.totalorder %s73, %s76
      %p82 = scmp.eq.s32.totalorder %s21, 0
      %p83 = por %p81, %p82
      %p84 = scmp.ne.s32.totalorder %s73, %s76
      %p85 = scmp.eq.s32.totalorder %s26, 3
      %p86 = por %p84, %p85
      %p87 = scmp.ne.s32.totalorder %s76, %s77
      %p88 = scmp.eq.s32.totalorder %s26, 0
      %p89 = por %p87, %p88
      %p90 = scmp.ne.s32.totalorder %s76, %s77
      %p91 = scmp.eq.s32.totalorder %s27, 3
      %p92 = por %p90, %p91
      %p94 = scmp.ne.s32.totalorder %s77, %s93
      %p95 = scmp.eq.s32.totalorder %s27, 0
      %p96 = por %p94, %p95
      %s97 = ssub.s32 %s29, %s36
      %p98 = scmp.eq.s32.totalorder %s97, 0
      %s100 = sadd.s32 %s99, 1
      %s101 = scalar_select %p98, %s99, %s100
      %p104 = pneg %p98
      %p105 = scmp.eq.s32.totalorder %s21, 3
      %p106 = por %p104, %p105
      %p107 = scmp.ne.s32.totalorder %s99, %s102
      %p108 = scmp.eq.s32.totalorder %s21, 0
      %p109 = por %p107, %p108
      %p110 = scmp.ne.s32.totalorder %s99, %s102
      %p111 = scmp.eq.s32.totalorder %s26, 3
      %p112 = por %p110, %p111
      %p113 = scmp.ne.s32.totalorder %s102, %s103
      %p114 = scmp.eq.s32.totalorder %s26, 0
      %p115 = por %p113, %p114
      %p116 = scmp.ne.s32.totalorder %s102, %s103
      %p117 = scmp.eq.s32.totalorder %s27, 3
      %p118 = por %p116, %p117
      %p120 = scmp.ne.s32.totalorder %s103, %s119
      %p121 = scmp.eq.s32.totalorder %s27, 0
      %p122 = por %p120, %p121
      %s123 = ssub.s32 %s28, %s40
      %p124 = scmp.eq.s32.totalorder %s123, 0
      %s126 = sadd.s32 %s125, 1
      %s127 = scalar_select %p124, %s125, %s126
      %p130 = pneg %p124
      %p131 = scmp.eq.s32.totalorder %s21, 3
      %p132 = por %p130, %p131
      %p133 = scmp.ne.s32.totalorder %s125, %s128
      %p134 = scmp.eq.s32.totalorder %s21, 0
      %p135 = por %p133, %p134
      %p136 = scmp.ne.s32.totalorder %s125, %s128
      %p137 = scmp.eq.s32.totalorder %s26, 3
      %p138 = por %p136, %p137
      %p139 = scmp.ne.s32.totalorder %s128, %s129
      %p140 = scmp.eq.s32.totalorder %s26, 0
      %p141 = por %p139, %p140
      %p142 = scmp.ne.s32.totalorder %s128, %s129
      %p143 = scmp.eq.s32.totalorder %s27, 3
      %p144 = por %p142, %p143
      %p146 = scmp.ne.s32.totalorder %s129, %s145
      %p147 = scmp.eq.s32.totalorder %s27, 0
      %p148 = por %p146, %p147
      %s149 = ssub.s32 %s29, %s36
      %p150 = scmp.eq.s32.totalorder %s149, 0
      %s152 = sadd.s32 %s151, 1
      %s153 = scalar_select %p150, %s151, %s152
      %p156 = pneg %p150
      %p157 = scmp.eq.s32.totalorder %s21, 3
      %p158 = por %p156, %p157
      %p159 = scmp.ne.s32.totalorder %s151, %s154
      %p160 = scmp.eq.s32.totalorder %s21, 0
      %p161 = por %p159, %p160
      %p162 = scmp.ne.s32.totalorder %s151, %s154
      %p163 = scmp.eq.s32.totalorder %s26, 3
      %p164 = por %p162, %p163
      %p165 = scmp.ne.s32.totalorder %s154, %s155
      %p166 = scmp.eq.s32.totalorder %s26, 0
      %p167 = por %p165, %p166
      %p168 = scmp.ne.s32.totalorder %s154, %s155
      %p169 = scmp.eq.s32.totalorder %s27, 3
      %p170 = por %p168, %p169
      %p172 = scmp.ne.s32.totalorder %s155, %s171
      %p173 = scmp.eq.s32.totalorder %s27, 0
      %p174 = por %p172, %p173
      %s175 = ssub.s32 %s28, %s40
      %p176 = scmp.eq.s32.totalorder %s175, 0
      %s178 = sadd.s32 %s177, 1
      %s179 = scalar_select %p176, %s177, %s178
      %p182 = pneg %p176
      %p183 = scmp.eq.s32.totalorder %s21, 3
      %p184 = por %p182, %p183
      %p185 = scmp.ne.s32.totalorder %s177, %s180
      %p186 = scmp.eq.s32.totalorder %s21, 0
      %p187 = por %p185, %p186
      %p188 = scmp.ne.s32.totalorder %s177, %s180
      %p189 = scmp.eq.s32.totalorder %s26, 3
      %p190 = por %p188, %p189
      %p191 = scmp.ne.s32.totalorder %s180, %s181
      %p192 = scmp.eq.s32.totalorder %s26, 0
      %p193 = por %p191, %p192
      %p194 = scmp.ne.s32.totalorder %s180, %s181
      %p195 = scmp.eq.s32.totalorder %s27, 3
      %p196 = por %p194, %p195
      %p198 = scmp.ne.s32.totalorder %s181, %s197
      %p199 = scmp.eq.s32.totalorder %s27, 0
      %p200 = por %p198, %p199
      %s201 = ssub.s32 %s28, %s40
      %s202 = ssub.s32 %s29, %s36
      %s203 = sor.u32 %s201, %s202
      %p204 = scmp.eq.s32.totalorder %s203, 0
      %s206 = sadd.s32 %s205, 1
      %s207 = scalar_select %p204, %s205, %s206
      %p210 = pneg %p204
      %p211 = scmp.eq.s32.totalorder %s21, 3
      %p212 = por %p210, %p211
      %p213 = scmp.ne.s32.totalorder %s205, %s208
      %p214 = scmp.eq.s32.totalorder %s21, 0
      %p215 = por %p213, %p214
      %p216 = scmp.ne.s32.totalorder %s205, %s208
      %p217 = scmp.eq.s32.totalorder %s26, 3
      %p218 = por %p216, %p217
      %p219 = scmp.ne.s32.totalorder %s208, %s209
      %p220 = scmp.eq.s32.totalorder %s26, 0
      %p221 = por %p219, %p220
      %p222 = scmp.ne.s32.totalorder %s208, %s209
      %p223 = scmp.eq.s32.totalorder %s27, 3
      %p224 = por %p222, %p223
      %p226 = scmp.ne.s32.totalorder %s209, %s225
      %p227 = scmp.eq.s32.totalorder %s27, 0
      %p228 = por %p226, %p227
      %p229 = scmp.le.s32.totalorder 1, %s21
      %p230 = scmp.lt.s32.totalorder %s21, 5
      %p231 = pnand %p229, %p230
      %p232 = pneg %p231
      // Predicated region
      $region9: #{tpu_custom_call.1} parent=5 // pred_check
        _
      $region10: #{tpu_custom_call.1} parent=5 // pred_check_branch
        %234 = sbr.rel (%p231) target = $region12
      $region11: #{tpu_custom_call.1} parent=5 // pred_region
        %s235 = ssub.s32 %s21, 1
      $region12: #{tpu_custom_call.1} parent=5 // pred_fallthru
        _
      %p236 = scmp.lt.s32.totalorder %s21, 4
      // Predicated region
      $region13: #{tpu_custom_call.1} parent=5 // pred_check
        %p237 = pneg %p236
      $region14: #{tpu_custom_call.1} parent=5 // pred_check_branch
        %239 = sbr.rel (%p237) target = $region16
      $region15: #{tpu_custom_call.1} parent=5 // pred_region
        // Predicated region
        $region17: #{tpu_custom_call.1} parent=15 // pred_check
          %p240 = pneg %p55
        $region18: #{tpu_custom_call.1} parent=15 // pred_check_branch
          %242 = sbr.rel (%p240) target = $region20
        $region19: #{tpu_custom_call.1} parent=15 // pred_region
          %s243 = sand.u32 %s45, 1
          %s244 = sand.u32 %s45, 1
          %s245 = smul.addr %s244, 128
          %s246 = scalar_lea.vmem [#allocation2], %s245
          %s247 = smul.u32 16, %s28
          %s248 = smul.addr %s247, 2
          %s249 = sadd.s32 %s29, %s248
          %s250 = smul.addr %s249, 8
          %s251 = scalar_lea.vmem %s0, %s250
          // Predicated region
          $region21: #{tpu_custom_call.1} parent=19 // pred_check
            _
          $region22: #{tpu_custom_call.1} parent=19 // pred_check_branch
            %253 = sbr.rel (0) target = $region24
          $region23: #{tpu_custom_call.1} parent=19 // pred_region
            // Predicated region
            $region25: #{tpu_custom_call.1} parent=23 // pred_check
              _
            $region26: #{tpu_custom_call.1} parent=23 // pred_check_branch
              %255 = sbr.rel (0) target = $region28
            $region27: #{tpu_custom_call.1} parent=23 // pred_region
              // Predicated region
              $region40: #{tpu_custom_call.1} parent=27 // pred_check
                _
              $region41: #{tpu_custom_call.1} parent=27 // pred_check_branch
                %301 = sbr.rel (0) target = $region43
              $region42: #{tpu_custom_call.1} parent=27 // pred_region
                loop: start=0, step=1, limit=1
                $region44: #{tpu_custom_call.1} parent=42 // loop_pre_header
                  _
                $region45: #{tpu_custom_call.1} parent=42 // loop_header
                  %s303 = sphi 0, %s307
                  %p304 = scmp.ge.s32.totalorder %s303, 1
                  %s308 = sphi %s251, %s251
                  %s309 = sphi %s246, %s246
                $region46: #{tpu_custom_call.1} parent=42 // loop_header_branch
                  %306 = sbr.rel (%p304) target = $region50
                $region47: #{tpu_custom_call.1} parent=42 // loop_body
                  %v310 = vld [vmem:[%s308] sm:$0xff]
                  %311 = vst [vmem:[%s309] sm:$0xff] %v310
                  %v312 = vld [vmem:[%s308 + $0x10] sm:$0xff]
                  %313 = vst [vmem:[%s309 + $0x8] sm:$0xff] %v312
                  %v314 = vld [vmem:[%s308 + $0x20] sm:$0xff]
                  %315 = vst [vmem:[%s309 + $0x10] sm:$0xff] %v314
                  %v316 = vld [vmem:[%s308 + $0x30] sm:$0xff]
                  %317 = vst [vmem:[%s309 + $0x18] sm:$0xff] %v316
                  %v318 = vld [vmem:[%s308 + $0x40] sm:$0xff]
                  %319 = vst [vmem:[%s309 + $0x20] sm:$0xff] %v318
                  %v320 = vld [vmem:[%s308 + $0x50] sm:$0xff]
                  %321 = vst [vmem:[%s309 + $0x28] sm:$0xff] %v320
                  %v322 = vld [vmem:[%s308 + $0x60] sm:$0xff]
                  %323 = vst [vmem:[%s309 + $0x30] sm:$0xff] %v322
                  %v324 = vld [vmem:[%s308 + $0x70] sm:$0xff]
                  %325 = vst [vmem:[%s309 + $0x38] sm:$0xff] %v324
                  %v326 = vld [vmem:[%s308 + $0x80] sm:$0xff]
                  %327 = vst [vmem:[%s309 + $0x40] sm:$0xff] %v326
                  %v328 = vld [vmem:[%s308 + $0x90] sm:$0xff]
                  %329 = vst [vmem:[%s309 + $0x48] sm:$0xff] %v328
                  %v330 = vld [vmem:[%s308 + $0xa0] sm:$0xff]
                  %331 = vst [vmem:[%s309 + $0x50] sm:$0xff] %v330
                  %v332 = vld [vmem:[%s308 + $0xb0] sm:$0xff]
                  %333 = vst [vmem:[%s309 + $0x58] sm:$0xff] %v332
                  %v334 = vld [vmem:[%s308 + $0xc0] sm:$0xff]
                  %335 = vst [vmem:[%s309 + $0x60] sm:$0xff] %v334
                  %v336 = vld [vmem:[%s308 + $0xd0] sm:$0xff]
                  %337 = vst [vmem:[%s309 + $0x68] sm:$0xff] %v336
                  %v338 = vld [vmem:[%s308 + $0xe0] sm:$0xff]
                  %339 = vst [vmem:[%s309 + $0x70] sm:$0xff] %v338
                  %v340 = vld [vmem:[%s308 + $0xf0] sm:$0xff]
                  %341 = vst [vmem:[%s309 + $0x78] sm:$0xff] %v340
                $region48: #{tpu_custom_call.1} parent=42 // loop_footer
                  %s307 = sadd.s32 1, %s303
                $region49: #{tpu_custom_call.1} parent=42 // loop_footer_branch
                  %302 = sbr.rel target = $region45
                $region50: #{tpu_custom_call.1} parent=42 // loop_exit
                  _
              $region43: #{tpu_custom_call.1} parent=27 // pred_fallthru
                _
              // Predicated region
              $region51: #{tpu_custom_call.1} parent=27 // pred_check
                _
              $region52: #{tpu_custom_call.1} parent=27 // pred_check_branch
                %343 = sbr.rel target = $region54
              $region53: #{tpu_custom_call.1} parent=27 // pred_region
                _
              $region54: #{tpu_custom_call.1} parent=27 // pred_fallthru
                _
            $region28: #{tpu_custom_call.1} parent=23 // pred_fallthru
              _
            // Predicated region
            $region29: #{tpu_custom_call.1} parent=23 // pred_check
              _
            $region30: #{tpu_custom_call.1} parent=23 // pred_check_branch
              %257 = sbr.rel target = $region32
            $region31: #{tpu_custom_call.1} parent=23 // pred_region
              %s259 = ssub.s32 256, 1
              loop: start=0, step=1, limit=1
              $region33: #{tpu_custom_call.1} parent=31 // loop_pre_header
                _
              $region34: #{tpu_custom_call.1} parent=31 // loop_header
                %s261 = sphi 0, %s265
                %p262 = scmp.ge.s32.totalorder %s261, 1
                %s266 = sphi %s251, %s251
                %s267 = sphi %s246, %s246
              $region35: #{tpu_custom_call.1} parent=31 // loop_header_branch
                %264 = sbr.rel (%p262) target = $region39
              $region36: #{tpu_custom_call.1} parent=31 // loop_body
                %v268 = vld [vmem:[%s266] sm:%s259]
                %269 = vst [vmem:[%s267] sm:%s259] %v268
                %v270 = vld [vmem:[%s266 + $0x10] sm:%s259]
                %271 = vst [vmem:[%s267 + $0x8] sm:%s259] %v270
                %v272 = vld [vmem:[%s266 + $0x20] sm:%s259]
                %273 = vst [vmem:[%s267 + $0x10] sm:%s259] %v272
                %v274 = vld [vmem:[%s266 + $0x30] sm:%s259]
                %275 = vst [vmem:[%s267 + $0x18] sm:%s259] %v274
                %v276 = vld [vmem:[%s266 + $0x40] sm:%s259]
                %277 = vst [vmem:[%s267 + $0x20] sm:%s259] %v276
                %v278 = vld [vmem:[%s266 + $0x50] sm:%s259]
                %279 = vst [vmem:[%s267 + $0x28] sm:%s259] %v278
                %v280 = vld [vmem:[%s266 + $0x60] sm:%s259]
                %281 = vst [vmem:[%s267 + $0x30] sm:%s259] %v280
                %v282 = vld [vmem:[%s266 + $0x70] sm:%s259]
                %283 = vst [vmem:[%s267 + $0x38] sm:%s259] %v282
                %v284 = vld [vmem:[%s266 + $0x80] sm:%s259]
                %285 = vst [vmem:[%s267 + $0x40] sm:%s259] %v284
                %v286 = vld [vmem:[%s266 + $0x90] sm:%s259]
                %287 = vst [vmem:[%s267 + $0x48] sm:%s259] %v286
                %v288 = vld [vmem:[%s266 + $0xa0] sm:%s259]
                %289 = vst [vmem:[%s267 + $0x50] sm:%s259] %v288
                %v290 = vld [vmem:[%s266 + $0xb0] sm:%s259]
                %291 = vst [vmem:[%s267 + $0x58] sm:%s259] %v290
                %v292 = vld [vmem:[%s266 + $0xc0] sm:%s259]
                %293 = vst [vmem:[%s267 + $0x60] sm:%s259] %v292
                %v294 = vld [vmem:[%s266 + $0xd0] sm:%s259]
                %295 = vst [vmem:[%s267 + $0x68] sm:%s259] %v294
                %v296 = vld [vmem:[%s266 + $0xe0] sm:%s259]
                %297 = vst [vmem:[%s267 + $0x70] sm:%s259] %v296
                %v298 = vld [vmem:[%s266 + $0xf0] sm:%s259]
                %299 = vst [vmem:[%s267 + $0x78] sm:%s259] %v298
              $region37: #{tpu_custom_call.1} parent=31 // loop_footer
                %s265 = sadd.s32 1, %s261
              $region38: #{tpu_custom_call.1} parent=31 // loop_footer_branch
                %260 = sbr.rel target = $region34
              $region39: #{tpu_custom_call.1} parent=31 // loop_exit
                _
            $region32: #{tpu_custom_call.1} parent=23 // pred_fallthru
              _
          $region24: #{tpu_custom_call.1} parent=19 // pred_fallthru
            _
          %344 = vnop
        $region20: #{tpu_custom_call.1} parent=15 // pred_fallthru
          _
        // Predicated region
        $region55: #{tpu_custom_call.1} parent=15 // pred_check
          %p345 = pneg %p83
        $region56: #{tpu_custom_call.1} parent=15 // pred_check_branch
          %347 = sbr.rel (%p345) target = $region58
        $region57: #{tpu_custom_call.1} parent=15 // pred_region
          %s348 = sand.u32 %s73, 1
          %s349 = scalar_lea.sflag [#allocation4], %s348
          %s350 = sand.u32 %s73, 1
          %s351 = smul.addr %s350, 128
          %s352 = scalar_lea.vmem [#allocation3], %s351
          %s353 = smul.u32 16, %s29
          %355 = vsyncadd %s349, 0
          %s356 = smul.addr %s353, 2
          %s357 = sadd.s32 %s28, %s356
          %s358 = smul.addr %s357, 8
          %s359 = scalar_lea.hbm %s1, %s358
          %s360 = sshll.u32 %s359, 4
          %s361 = int_to_ptr.hbm [resolvable:$true] %s360
          %s362 = sshll.u32 %s352, 4
          %s363 = int_to_ptr.vmem [resolvable:$true] %s362
          %368 = dma.hbm_to_vmem [thread:$0]  %s361, 2048, %s363, %s349, 256, 128, 8
        $region58: #{tpu_custom_call.1} parent=15 // pred_fallthru
          _
        // Predicated region
        $region59: #{tpu_custom_call.1} parent=15 // pred_check
          %p369 = pneg %p109
        $region60: #{tpu_custom_call.1} parent=15 // pred_check_branch
          %371 = sbr.rel (%p369) target = $region62
        $region61: #{tpu_custom_call.1} parent=15 // pred_region
          %p372 = scmp.lt.s32.totalorder %s29, 1
          %s373 = scalar_select %p372, %s29, 1
          %s374 = scalar_lea.vmem %s2, %s373
        $region62: #{tpu_custom_call.1} parent=15 // pred_fallthru
          _
        // Predicated region
        $region63: #{tpu_custom_call.1} parent=15 // pred_check
          %p375 = pneg %p135
        $region64: #{tpu_custom_call.1} parent=15 // pred_check_branch
          %377 = sbr.rel (%p375) target = $region66
        $region65: #{tpu_custom_call.1} parent=15 // pred_region
          %s378 = smul.u32 16, %s28
          %p379 = scmp.lt.s32.totalorder %s378, 31
          %s380 = scalar_select %p379, %s378, 31
          %s381 = smul.addr %s380, 8
          %s382 = scalar_lea.vmem %s3, %s381
          %s383 = smul.u32 16, %s28
        $region66: #{tpu_custom_call.1} parent=15 // pred_fallthru
          _
        // Predicated region
        $region67: #{tpu_custom_call.1} parent=15 // pred_check
          %p384 = pneg %p161
        $region68: #{tpu_custom_call.1} parent=15 // pred_check_branch
          %386 = sbr.rel (%p384) target = $region70
        $region69: #{tpu_custom_call.1} parent=15 // pred_region
          %s387 = sand.u32 %s151, 1
          %s388 = scalar_lea.sflag [#allocation7], %s387
          %s389 = sand.u32 %s151, 1
          %s390 = scalar_lea.vmem [#allocation6], %s389
          %392 = vsyncadd %s388, 0
          %s393 = scalar_lea.hbm %s4, %s29
          %s395 = sshll.u32 %s393, 4
          %s396 = int_to_ptr.hbm [resolvable:$true] %s395
          %s397 = sshll.u32 %s390, 4
          %s398 = int_to_ptr.vmem [resolvable:$true] %s397
          %400 = dma.hbm_to_vmem [thread:$0]  %s396, 16, %s398, %s388
        $region70: #{tpu_custom_call.1} parent=15 // pred_fallthru
          _
        // Predicated region
        $region71: #{tpu_custom_call.1} parent=15 // pred_check
          %p401 = pneg %p187
        $region72: #{tpu_custom_call.1} parent=15 // pred_check_branch
          %403 = sbr.rel (%p401) target = $region74
        $region73: #{tpu_custom_call.1} parent=15 // pred_region
          %s404 = smul.u32 16, %s28
          %p405 = scmp.lt.s32.totalorder %s404, 31
          %s406 = scalar_select %p405, %s404, 31
          %s407 = smul.addr %s406, 8
          %s408 = scalar_lea.vmem %s5, %s407
          %s409 = smul.u32 16, %s28
        $region74: #{tpu_custom_call.1} parent=15 // pred_fallthru
          _
      $region16: #{tpu_custom_call.1} parent=5 // pred_fallthru
        _
      %p410 = scmp.le.s32.totalorder 1, %s21
      %p411 = scmp.lt.s32.totalorder %s21, 5
      %p412 = pnand %p410, %p411
      %p413 = pneg %p412
      // Predicated region
      $region75: #{tpu_custom_call.1} parent=5 // pred_check
        _
      $region76: #{tpu_custom_call.1} parent=5 // pred_check_branch
        %415 = sbr.rel (%p412) target = $region78
      $region77: #{tpu_custom_call.1} parent=5 // pred_region
        %s416 = ssub.s32 %s21, 1
        %s417 = sand.u32 %s48, 1
        %s418 = sand.u32 %s48, 1
        %s419 = smul.addr %s418, 128
        %s420 = scalar_lea.vmem [#allocation2], %s419
        // Predicated region
        $region79: #{tpu_custom_call.1} parent=77 // pred_check
          %p421 = pneg %p61
        $region80: #{tpu_custom_call.1} parent=77 // pred_check_branch
          %423 = sbr.rel (%p421) target = $region82
        $region81: #{tpu_custom_call.1} parent=77 // pred_region
          _
        $region82: #{tpu_custom_call.1} parent=77 // pred_fallthru
          _
        %s424 = sand.u32 %s76, 1
        %s425 = scalar_lea.sflag [#allocation4], %s424
        %s426 = sand.u32 %s76, 1
        %s427 = smul.addr %s426, 128
        %s428 = scalar_lea.vmem [#allocation3], %s427
        // Predicated region
        $region83: #{tpu_custom_call.1} parent=77 // pred_check
          %p429 = pneg %p89
        $region84: #{tpu_custom_call.1} parent=77 // pred_check_branch
          %431 = sbr.rel (%p429) target = $region86
        $region85: #{tpu_custom_call.1} parent=77 // pred_region
          %433 = dma.done %s425, 2048
        $region86: #{tpu_custom_call.1} parent=77 // pred_fallthru
          _
        %s434 = sand.u32 %s154, 1
        %s435 = scalar_lea.sflag [#allocation7], %s434
        %s436 = sand.u32 %s154, 1
        %s437 = scalar_lea.vmem [#allocation6], %s436
        // Predicated region
        $region87: #{tpu_custom_call.1} parent=77 // pred_check
          %p438 = pneg %p167
        $region88: #{tpu_custom_call.1} parent=77 // pred_check_branch
          %440 = sbr.rel (%p438) target = $region90
        $region89: #{tpu_custom_call.1} parent=77 // pred_region
          %442 = dma.done %s435, 16
        $region90: #{tpu_custom_call.1} parent=77 // pred_fallthru
          _
        %s443 = sand.u32 %s48, 1
        %s444 = sand.u32 %s48, 1
        %s445 = smul.addr %s444, 128
        %s446 = scalar_lea.vmem [#allocation2], %s445
        %p447 = pneg %p61
        %p448 = pneg %p58
        %s449 = sand.u32 %s76, 1
        %s450 = scalar_lea.sflag [#allocation4], %s449
        %s451 = sand.u32 %s76, 1
        %s452 = smul.addr %s451, 128
        %s453 = scalar_lea.vmem [#allocation3], %s452
        %p454 = pneg %p89
        %p455 = pneg %p86
        %p456 = scmp.lt.s32.totalorder %s31, 1
        %s457 = scalar_select %p456, %s31, 1
        %s458 = scalar_lea.vmem %s2, %s457
        %p459 = pneg %p115
        %p460 = pneg %p112
        %s461 = smul.u32 16, %s30
        %p462 = scmp.lt.s32.totalorder %s461, 31
        %s463 = scalar_select %p462, %s461, 31
        %s464 = smul.addr %s463, 8
        %s465 = scalar_lea.vmem %s3, %s464
        %p466 = pneg %p141
        %p467 = pneg %p138
        %s468 = sand.u32 %s154, 1
        %s469 = scalar_lea.sflag [#allocation7], %s468
        %s470 = sand.u32 %s154, 1
        %s471 = scalar_lea.vmem [#allocation6], %s470
        %p472 = pneg %p167
        %p473 = pneg %p164
        %s474 = smul.u32 16, %s30
        %p475 = scmp.lt.s32.totalorder %s474, 31
        %s476 = scalar_select %p475, %s474, 31
        %s477 = smul.addr %s476, 8
        %s478 = scalar_lea.vmem %s5, %s477
        %p479 = pneg %p193
        %p480 = pneg %p190
        %p481 = pneg %p221
        %p482 = pneg %p218
        %s483 = sand.u32 %s208, 1
        %s484 = scalar_lea.sflag [#allocation5], %s483
        %s485 = sand.u32 %s208, 1
        %s486 = smul.addr %s485, 128
        %s487 = scalar_lea.vmem [#allocation8], %s486
        %s488 = smul.u32 16, %s30
        %s489 = smul.u32 16, %s31
        %p490 = scmp.lt.s32.totalorder %s31, 1
        %s491 = scalar_select %p490, %s31, 1
        %s492 = scalar_lea.vmem %s2, %s491
        %s493 = smul.u32 16, %s30
        %p494 = scmp.lt.s32.totalorder %s493, 31
        %s495 = scalar_select %p494, %s493, 31
        %s496 = smul.addr %s495, 8
        %s497 = scalar_lea.vmem %s3, %s496
        %s498 = smul.u32 16, %s30
        %s499 = smul.u32 16, %s30
        %p500 = scmp.lt.s32.totalorder %s499, 31
        %s501 = scalar_select %p500, %s499, 31
        %s502 = smul.addr %s501, 8
        %s503 = scalar_lea.vmem %s5, %s502
        %s504 = smul.u32 16, %s30
        %s505 = smul.u32 16, %s30
        %v506 = vld [vmem:[%s492] sm:$0x1]
        %v507 = vld [vmem:[%s497] sm:$0xff]
        %v508 = vld [vmem:[%s497 + $0x8] sm:$0xff]
        %v509 = vld [vmem:[%s497 + $0x10] sm:$0xff]
        %v510 = vld [vmem:[%s497 + $0x18] sm:$0xff]
        %v511 = vld [vmem:[%s497 + $0x20] sm:$0xff]
        %v512 = vld [vmem:[%s497 + $0x28] sm:$0xff]
        %v513 = vld [vmem:[%s497 + $0x30] sm:$0xff]
        %v514 = vld [vmem:[%s497 + $0x38] sm:$0xff]
        %v515 = vld [vmem:[%s497 + $0x40] sm:$0xff]
        %v516 = vld [vmem:[%s497 + $0x48] sm:$0xff]
        %v517 = vld [vmem:[%s497 + $0x50] sm:$0xff]
        %v518 = vld [vmem:[%s497 + $0x58] sm:$0xff]
        %v519 = vld [vmem:[%s497 + $0x60] sm:$0xff]
        %v520 = vld [vmem:[%s497 + $0x68] sm:$0xff]
        %v521 = vld [vmem:[%s497 + $0x70] sm:$0xff]
        %v522 = vld [vmem:[%s497 + $0x78] sm:$0xff]
        %v523 = vld [vmem:[%s437] sm:$0x1]
        %v524 = vld [vmem:[%s503] sm:$0xff]
        %v525 = vld [vmem:[%s503 + $0x8] sm:$0xff]
        %v526 = vld [vmem:[%s503 + $0x10] sm:$0xff]
        %v527 = vld [vmem:[%s503 + $0x18] sm:$0xff]
        %v528 = vld [vmem:[%s503 + $0x20] sm:$0xff]
        %v529 = vld [vmem:[%s503 + $0x28] sm:$0xff]
        %v530 = vld [vmem:[%s503 + $0x30] sm:$0xff]
        %v531 = vld [vmem:[%s503 + $0x38] sm:$0xff]
        %v532 = vld [vmem:[%s503 + $0x40] sm:$0xff]
        %v533 = vld [vmem:[%s503 + $0x48] sm:$0xff]
        %v534 = vld [vmem:[%s503 + $0x50] sm:$0xff]
        %v535 = vld [vmem:[%s503 + $0x58] sm:$0xff]
        %v536 = vld [vmem:[%s503 + $0x60] sm:$0xff]
        %v537 = vld [vmem:[%s503 + $0x68] sm:$0xff]
        %v538 = vld [vmem:[%s503 + $0x70] sm:$0xff]
        %v539 = vld [vmem:[%s503 + $0x78] sm:$0xff]
        %v541 = vperm.slane %v506, 0
        %544 = vset.pattern.permute.xlu0 0
        %545 = vperm.xlu0 %544, %v524
        %v546 = vpop.permute.xlu0 %545
        %549 = vset.pattern.permute.xlu0 0
        %550 = vperm.xlu0 %549, %v525
        %v551 = vpop.permute.xlu0 %550
        %554 = vset.pattern.permute.xlu0 0
        %555 = vperm.xlu0 %554, %v526
        %v556 = vpop.permute.xlu0 %555
        %559 = vset.pattern.permute.xlu0 0
        %560 = vperm.xlu0 %559, %v527
        %v561 = vpop.permute.xlu0 %560
        %564 = vset.pattern.permute.xlu0 0
        %565 = vperm.xlu0 %564, %v528
        %v566 = vpop.permute.xlu0 %565
        %569 = vset.pattern.permute.xlu0 0
        %570 = vperm.xlu0 %569, %v529
        %v571 = vpop.permute.xlu0 %570
        %574 = vset.pattern.permute.xlu0 0
        %575 = vperm.xlu0 %574, %v530
        %v576 = vpop.permute.xlu0 %575
        %579 = vset.pattern.permute.xlu0 0
        %580 = vperm.xlu0 %579, %v531
        %v581 = vpop.permute.xlu0 %580
        %584 = vset.pattern.permute.xlu0 0
        %585 = vperm.xlu0 %584, %v532
        %v586 = vpop.permute.xlu0 %585
        %589 = vset.pattern.permute.xlu0 0
        %590 = vperm.xlu0 %589, %v533
        %v591 = vpop.permute.xlu0 %590
        %594 = vset.pattern.permute.xlu0 0
        %595 = vperm.xlu0 %594, %v534
        %v596 = vpop.permute.xlu0 %595
        %599 = vset.pattern.permute.xlu0 0
        %600 = vperm.xlu0 %599, %v535
        %v601 = vpop.permute.xlu0 %600
        %604 = vset.pattern.permute.xlu0 0
        %605 = vperm.xlu0 %604, %v536
        %v606 = vpop.permute.xlu0 %605
        %609 = vset.pattern.permute.xlu0 0
        %610 = vperm.xlu0 %609, %v537
        %v611 = vpop.permute.xlu0 %610
        %614 = vset.pattern.permute.xlu0 0
        %615 = vperm.xlu0 %614, %v538
        %v616 = vpop.permute.xlu0 %615
        %619 = vset.pattern.permute.xlu0 0
        %620 = vperm.xlu0 %619, %v539
        %v621 = vpop.permute.xlu0 %620
        %v623 = vsub.f32 %v541, %v546
        %v624 = vsub.f32 %v541, %v551
        %v625 = vsub.f32 %v541, %v556
        %v626 = vsub.f32 %v541, %v561
        %v627 = vsub.f32 %v541, %v566
        %v628 = vsub.f32 %v541, %v571
        %v629 = vsub.f32 %v541, %v576
        %v630 = vsub.f32 %v541, %v581
        %v631 = vsub.f32 %v541, %v586
        %v632 = vsub.f32 %v541, %v591
        %v633 = vsub.f32 %v541, %v596
        %v634 = vsub.f32 %v541, %v601
        %v635 = vsub.f32 %v541, %v606
        %v636 = vsub.f32 %v541, %v611
        %v637 = vsub.f32 %v541, %v616
        %v638 = vsub.f32 %v541, %v621
        %vm639 = vcmp.gt.f32.partialorder %v623, 0.0
        %vm640 = vcmp.gt.f32.partialorder %v624, 0.0
        %vm641 = vcmp.gt.f32.partialorder %v625, 0.0
        %vm642 = vcmp.gt.f32.partialorder %v626, 0.0
        %vm643 = vcmp.gt.f32.partialorder %v627, 0.0
        %vm644 = vcmp.gt.f32.partialorder %v628, 0.0
        %vm645 = vcmp.gt.f32.partialorder %v629, 0.0
        %vm646 = vcmp.gt.f32.partialorder %v630, 0.0
        %vm647 = vcmp.gt.f32.partialorder %v631, 0.0
        %vm648 = vcmp.gt.f32.partialorder %v632, 0.0
        %vm649 = vcmp.gt.f32.partialorder %v633, 0.0
        %vm650 = vcmp.gt.f32.partialorder %v634, 0.0
        %vm651 = vcmp.gt.f32.partialorder %v635, 0.0
        %vm652 = vcmp.gt.f32.partialorder %v636, 0.0
        %vm653 = vcmp.gt.f32.partialorder %v637, 0.0
        %vm654 = vcmp.gt.f32.partialorder %v638, 0.0
        %v655 = vmul.f32 %v623, 0.5
        %v656 = vmul.f32 %v624, 0.5
        %v657 = vmul.f32 %v625, 0.5
        %v658 = vmul.f32 %v626, 0.5
        %v659 = vmul.f32 %v627, 0.5
        %v660 = vmul.f32 %v628, 0.5
        %v661 = vmul.f32 %v629, 0.5
        %v662 = vmul.f32 %v630, 0.5
        %v663 = vmul.f32 %v631, 0.5
        %v664 = vmul.f32 %v632, 0.5
        %v665 = vmul.f32 %v633, 0.5
        %v666 = vmul.f32 %v634, 0.5
        %v667 = vmul.f32 %v635, 0.5
        %v668 = vmul.f32 %v636, 0.5
        %v669 = vmul.f32 %v637, 0.5
        %v670 = vmul.f32 %v638, 0.5
        %v671 = vtanh.pop %v655
        %v672 = vtanh.pop %v656
        %v673 = vtanh.pop %v657
        %v674 = vtanh.pop %v658
        %v675 = vtanh.pop %v659
        %v676 = vtanh.pop %v660
        %v677 = vtanh.pop %v661
        %v678 = vtanh.pop %v662
        %v679 = vtanh.pop %v663
        %v680 = vtanh.pop %v664
        %v681 = vtanh.pop %v665
        %v682 = vtanh.pop %v666
        %v683 = vtanh.pop %v667
        %v684 = vtanh.pop %v668
        %v685 = vtanh.pop %v669
        %v686 = vtanh.pop %v670
        %v687 = vadd.f32 %v671, 1.0
        %v688 = vadd.f32 %v672, 1.0
        %v689 = vadd.f32 %v673, 1.0
        %v690 = vadd.f32 %v674, 1.0
        %v691 = vadd.f32 %v675, 1.0
        %v692 = vadd.f32 %v676, 1.0
        %v693 = vadd.f32 %v677, 1.0
        %v694 = vadd.f32 %v678, 1.0
        %v695 = vadd.f32 %v679, 1.0
        %v696 = vadd.f32 %v680, 1.0
        %v697 = vadd.f32 %v681, 1.0
        %v698 = vadd.f32 %v682, 1.0
        %v699 = vadd.f32 %v683, 1.0
        %v700 = vadd.f32 %v684, 1.0
        %v701 = vadd.f32 %v685, 1.0
        %v702 = vadd.f32 %v686, 1.0
        %v703 = vmul.f32 %v687, 0.5
        %v704 = vmul.f32 %v688, 0.5
        %v705 = vmul.f32 %v689, 0.5
        %v706 = vmul.f32 %v690, 0.5
        %v707 = vmul.f32 %v691, 0.5
        %v708 = vmul.f32 %v692, 0.5
        %v709 = vmul.f32 %v693, 0.5
        %v710 = vmul.f32 %v694, 0.5
        %v711 = vmul.f32 %v695, 0.5
        %v712 = vmul.f32 %v696, 0.5
        %v713 = vmul.f32 %v697, 0.5
        %v714 = vmul.f32 %v698, 0.5
        %v715 = vmul.f32 %v699, 0.5
        %v716 = vmul.f32 %v700, 0.5
        %v717 = vmul.f32 %v701, 0.5
        %v718 = vmul.f32 %v702, 0.5
        %v719 = vmul.f32 %v703, 1.1
        %v720 = vmul.f32 %v704, 1.1
        %v721 = vmul.f32 %v705, 1.1
        %v722 = vmul.f32 %v706, 1.1
        %v723 = vmul.f32 %v707, 1.1
        %v724 = vmul.f32 %v708, 1.1
        %v725 = vmul.f32 %v709, 1.1
        %v726 = vmul.f32 %v710, 1.1
        %v727 = vmul.f32 %v711, 1.1
        %v728 = vmul.f32 %v712, 1.1
        %v729 = vmul.f32 %v713, 1.1
        %v730 = vmul.f32 %v714, 1.1
        %v731 = vmul.f32 %v715, 1.1
        %v732 = vmul.f32 %v716, 1.1
        %v733 = vmul.f32 %v717, 1.1
        %v734 = vmul.f32 %v718, 1.1
        %v735 = vsel %vm639, %v719, 0.2
        %v736 = vsel %vm640, %v720, 0.2
        %v737 = vsel %vm641, %v721, 0.2
        %v738 = vsel %vm642, %v722, 0.2
        %v739 = vsel %vm643, %v723, 0.2
        %v740 = vsel %vm644, %v724, 0.2
        %v741 = vsel %vm645, %v725, 0.2
        %v742 = vsel %vm646, %v726, 0.2
        %v743 = vsel %vm647, %v727, 0.2
        %v744 = vsel %vm648, %v728, 0.2
        %v745 = vsel %vm649, %v729, 0.2
        %v746 = vsel %vm650, %v730, 0.2
        %v747 = vsel %vm651, %v731, 0.2
        %v748 = vsel %vm652, %v732, 0.2
        %v749 = vsel %vm653, %v733, 0.2
        %v750 = vsel %vm654, %v734, 0.2
        %v752 = vperm.slane %v523, 0
        %v754 = vsub.f32 %v735, %v752
        %v755 = vsub.f32 %v736, %v752
        %v756 = vsub.f32 %v737, %v752
        %v757 = vsub.f32 %v738, %v752
        %v758 = vsub.f32 %v739, %v752
        %v759 = vsub.f32 %v740, %v752
        %v760 = vsub.f32 %v741, %v752
        %v761 = vsub.f32 %v742, %v752
        %v762 = vsub.f32 %v743, %v752
        %v763 = vsub.f32 %v744, %v752
        %v764 = vsub.f32 %v745, %v752
        %v765 = vsub.f32 %v746, %v752
        %v766 = vsub.f32 %v747, %v752
        %v767 = vsub.f32 %v748, %v752
        %v768 = vsub.f32 %v749, %v752
        %v769 = vsub.f32 %v750, %v752
        %v770 = vld [vmem:[%s420] sm:$0xff]
        %v771 = vld [vmem:[%s420 + $0x8] sm:$0xff]
        %v772 = vld [vmem:[%s420 + $0x10] sm:$0xff]
        %v773 = vld [vmem:[%s420 + $0x18] sm:$0xff]
        %v774 = vld [vmem:[%s420 + $0x20] sm:$0xff]
        %v775 = vld [vmem:[%s420 + $0x28] sm:$0xff]
        %v776 = vld [vmem:[%s420 + $0x30] sm:$0xff]
        %v777 = vld [vmem:[%s420 + $0x38] sm:$0xff]
        %v778 = vld [vmem:[%s420 + $0x40] sm:$0xff]
        %v779 = vld [vmem:[%s420 + $0x48] sm:$0xff]
        %v780 = vld [vmem:[%s420 + $0x50] sm:$0xff]
        %v781 = vld [vmem:[%s420 + $0x58] sm:$0xff]
        %v782 = vld [vmem:[%s420 + $0x60] sm:$0xff]
        %v783 = vld [vmem:[%s420 + $0x68] sm:$0xff]
        %v784 = vld [vmem:[%s420 + $0x70] sm:$0xff]
        %v785 = vld [vmem:[%s420 + $0x78] sm:$0xff]
        %v786 = vmul.f32 %v770, 0.5
        %v787 = vmul.f32 %v771, 0.5
        %v788 = vmul.f32 %v772, 0.5
        %v789 = vmul.f32 %v773, 0.5
        %v790 = vmul.f32 %v774, 0.5
        %v791 = vmul.f32 %v775, 0.5
        %v792 = vmul.f32 %v776, 0.5
        %v793 = vmul.f32 %v777, 0.5
        %v794 = vmul.f32 %v778, 0.5
        %v795 = vmul.f32 %v779, 0.5
        %v796 = vmul.f32 %v780, 0.5
        %v797 = vmul.f32 %v781, 0.5
        %v798 = vmul.f32 %v782, 0.5
        %v799 = vmul.f32 %v783, 0.5
        %v800 = vmul.f32 %v784, 0.5
        %v801 = vmul.f32 %v785, 0.5
        %v802 = vtanh.pop %v786
        %v803 = vtanh.pop %v787
        %v804 = vtanh.pop %v788
        %v805 = vtanh.pop %v789
        %v806 = vtanh.pop %v790
        %v807 = vtanh.pop %v791
        %v808 = vtanh.pop %v792
        %v809 = vtanh.pop %v793
        %v810 = vtanh.pop %v794
        %v811 = vtanh.pop %v795
        %v812 = vtanh.pop %v796
        %v813 = vtanh.pop %v797
        %v814 = vtanh.pop %v798
        %v815 = vtanh.pop %v799
        %v816 = vtanh.pop %v800
        %v817 = vtanh.pop %v801
        %v818 = vadd.f32 %v802, 1.0
        %v819 = vadd.f32 %v803, 1.0
        %v820 = vadd.f32 %v804, 1.0
        %v821 = vadd.f32 %v805, 1.0
        %v822 = vadd.f32 %v806, 1.0
        %v823 = vadd.f32 %v807, 1.0
        %v824 = vadd.f32 %v808, 1.0
        %v825 = vadd.f32 %v809, 1.0
        %v826 = vadd.f32 %v810, 1.0
        %v827 = vadd.f32 %v811, 1.0
        %v828 = vadd.f32 %v812, 1.0
        %v829 = vadd.f32 %v813, 1.0
        %v830 = vadd.f32 %v814, 1.0
        %v831 = vadd.f32 %v815, 1.0
        %v832 = vadd.f32 %v816, 1.0
        %v833 = vadd.f32 %v817, 1.0
        %v834 = vmul.f32 %v818, 0.5
        %v835 = vmul.f32 %v819, 0.5
        %v836 = vmul.f32 %v820, 0.5
        %v837 = vmul.f32 %v821, 0.5
        %v838 = vmul.f32 %v822, 0.5
        %v839 = vmul.f32 %v823, 0.5
        %v840 = vmul.f32 %v824, 0.5
        %v841 = vmul.f32 %v825, 0.5
        %v842 = vmul.f32 %v826, 0.5
        %v843 = vmul.f32 %v827, 0.5
        %v844 = vmul.f32 %v828, 0.5
        %v845 = vmul.f32 %v829, 0.5
        %v846 = vmul.f32 %v830, 0.5
        %v847 = vmul.f32 %v831, 0.5
        %v848 = vmul.f32 %v832, 0.5
        %v849 = vmul.f32 %v833, 0.5
        %v850 = vmul.f32 %v834, %v754
        %v851 = vmul.f32 %v835, %v755
        %v852 = vmul.f32 %v836, %v756
        %v853 = vmul.f32 %v837, %v757
        %v854 = vmul.f32 %v838, %v758
        %v855 = vmul.f32 %v839, %v759
        %v856 = vmul.f32 %v840, %v760
        %v857 = vmul.f32 %v841, %v761
        %v858 = vmul.f32 %v842, %v762
        %v859 = vmul.f32 %v843, %v763
        %v860 = vmul.f32 %v844, %v764
        %v861 = vmul.f32 %v845, %v765
        %v862 = vmul.f32 %v846, %v766
        %v863 = vmul.f32 %v847, %v767
        %v864 = vmul.f32 %v848, %v768
        %v865 = vmul.f32 %v849, %v769
        %867 = vset.pattern.permute.xlu0 0
        %868 = vperm.xlu0 %867, %v507
        %v869 = vpop.permute.xlu0 %868
        %872 = vset.pattern.permute.xlu0 0
        %873 = vperm.xlu0 %872, %v508
        %v874 = vpop.permute.xlu0 %873
        %877 = vset.pattern.permute.xlu0 0
        %878 = vperm.xlu0 %877, %v509
        %v879 = vpop.permute.xlu0 %878
        %882 = vset.pattern.permute.xlu0 0
        %883 = vperm.xlu0 %882, %v510
        %v884 = vpop.permute.xlu0 %883
        %887 = vset.pattern.permute.xlu0 0
        %888 = vperm.xlu0 %887, %v511
        %v889 = vpop.permute.xlu0 %888
        %892 = vset.pattern.permute.xlu0 0
        %893 = vperm.xlu0 %892, %v512
        %v894 = vpop.permute.xlu0 %893
        %897 = vset.pattern.permute.xlu0 0
        %898 = vperm.xlu0 %897, %v513
        %v899 = vpop.permute.xlu0 %898
        %902 = vset.pattern.permute.xlu0 0
        %903 = vperm.xlu0 %902, %v514
        %v904 = vpop.permute.xlu0 %903
        %907 = vset.pattern.permute.xlu0 0
        %908 = vperm.xlu0 %907, %v515
        %v909 = vpop.permute.xlu0 %908
        %912 = vset.pattern.permute.xlu0 0
        %913 = vperm.xlu0 %912, %v516
        %v914 = vpop.permute.xlu0 %913
        %917 = vset.pattern.permute.xlu0 0
        %918 = vperm.xlu0 %917, %v517
        %v919 = vpop.permute.xlu0 %918
        %922 = vset.pattern.permute.xlu0 0
        %923 = vperm.xlu0 %922, %v518
        %v924 = vpop.permute.xlu0 %923
        %927 = vset.pattern.permute.xlu0 0
        %928 = vperm.xlu0 %927, %v519
        %v929 = vpop.permute.xlu0 %928
        %932 = vset.pattern.permute.xlu0 0
        %933 = vperm.xlu0 %932, %v520
        %v934 = vpop.permute.xlu0 %933
        %937 = vset.pattern.permute.xlu0 0
        %938 = vperm.xlu0 %937, %v521
        %v939 = vpop.permute.xlu0 %938
        %942 = vset.pattern.permute.xlu0 0
        %943 = vperm.xlu0 %942, %v522
        %v944 = vpop.permute.xlu0 %943
        %v946 = vsub.f32 %v869, %v752
        %v947 = vsub.f32 %v874, %v752
        %v948 = vsub.f32 %v879, %v752
        %v949 = vsub.f32 %v884, %v752
        %v950 = vsub.f32 %v889, %v752
        %v951 = vsub.f32 %v894, %v752
        %v952 = vsub.f32 %v899, %v752
        %v953 = vsub.f32 %v904, %v752
        %v954 = vsub.f32 %v909, %v752
        %v955 = vsub.f32 %v914, %v752
        %v956 = vsub.f32 %v919, %v752
        %v957 = vsub.f32 %v924, %v752
        %v958 = vsub.f32 %v929, %v752
        %v959 = vsub.f32 %v934, %v752
        %v960 = vsub.f32 %v939, %v752
        %v961 = vsub.f32 %v944, %v752
        %vm962 = vcmp.gt.f32.partialorder %v946, 0.0
        %vm963 = vcmp.gt.f32.partialorder %v947, 0.0
        %vm964 = vcmp.gt.f32.partialorder %v948, 0.0
        %vm965 = vcmp.gt.f32.partialorder %v949, 0.0
        %vm966 = vcmp.gt.f32.partialorder %v950, 0.0
        %vm967 = vcmp.gt.f32.partialorder %v951, 0.0
        %vm968 = vcmp.gt.f32.partialorder %v952, 0.0
        %vm969 = vcmp.gt.f32.partialorder %v953, 0.0
        %vm970 = vcmp.gt.f32.partialorder %v954, 0.0
        %vm971 = vcmp.gt.f32.partialorder %v955, 0.0
        %vm972 = vcmp.gt.f32.partialorder %v956, 0.0
        %vm973 = vcmp.gt.f32.partialorder %v957, 0.0
        %vm974 = vcmp.gt.f32.partialorder %v958, 0.0
        %vm975 = vcmp.gt.f32.partialorder %v959, 0.0
        %vm976 = vcmp.gt.f32.partialorder %v960, 0.0
        %vm977 = vcmp.gt.f32.partialorder %v961, 0.0
        %v978 = vmul.f32 %v946, 0.5
        %v979 = vmul.f32 %v947, 0.5
        %v980 = vmul.f32 %v948, 0.5
        %v981 = vmul.f32 %v949, 0.5
        %v982 = vmul.f32 %v950, 0.5
        %v983 = vmul.f32 %v951, 0.5
        %v984 = vmul.f32 %v952, 0.5
        %v985 = vmul.f32 %v953, 0.5
        %v986 = vmul.f32 %v954, 0.5
        %v987 = vmul.f32 %v955, 0.5
        %v988 = vmul.f32 %v956, 0.5
        %v989 = vmul.f32 %v957, 0.5
        %v990 = vmul.f32 %v958, 0.5
        %v991 = vmul.f32 %v959, 0.5
        %v992 = vmul.f32 %v960, 0.5
        %v993 = vmul.f32 %v961, 0.5
        %v994 = vtanh.pop %v978
        %v995 = vtanh.pop %v979
        %v996 = vtanh.pop %v980
        %v997 = vtanh.pop %v981
        %v998 = vtanh.pop %v982
        %v999 = vtanh.pop %v983
        %v1000 = vtanh.pop %v984
        %v1001 = vtanh.pop %v985
        %v1002 = vtanh.pop %v986
        %v1003 = vtanh.pop %v987
        %v1004 = vtanh.pop %v988
        %v1005 = vtanh.pop %v989
        %v1006 = vtanh.pop %v990
        %v1007 = vtanh.pop %v991
        %v1008 = vtanh.pop %v992
        %v1009 = vtanh.pop %v993
        %v1010 = vadd.f32 %v994, 1.0
        %v1011 = vadd.f32 %v995, 1.0
        %v1012 = vadd.f32 %v996, 1.0
        %v1013 = vadd.f32 %v997, 1.0
        %v1014 = vadd.f32 %v998, 1.0
        %v1015 = vadd.f32 %v999, 1.0
        %v1016 = vadd.f32 %v1000, 1.0
        %v1017 = vadd.f32 %v1001, 1.0
        %v1018 = vadd.f32 %v1002, 1.0
        %v1019 = vadd.f32 %v1003, 1.0
        %v1020 = vadd.f32 %v1004, 1.0
        %v1021 = vadd.f32 %v1005, 1.0
        %v1022 = vadd.f32 %v1006, 1.0
        %v1023 = vadd.f32 %v1007, 1.0
        %v1024 = vadd.f32 %v1008, 1.0
        %v1025 = vadd.f32 %v1009, 1.0
        %v1026 = vmul.f32 %v1010, 0.5
        %v1027 = vmul.f32 %v1011, 0.5
        %v1028 = vmul.f32 %v1012, 0.5
        %v1029 = vmul.f32 %v1013, 0.5
        %v1030 = vmul.f32 %v1014, 0.5
        %v1031 = vmul.f32 %v1015, 0.5
        %v1032 = vmul.f32 %v1016, 0.5
        %v1033 = vmul.f32 %v1017, 0.5
        %v1034 = vmul.f32 %v1018, 0.5
        %v1035 = vmul.f32 %v1019, 0.5
        %v1036 = vmul.f32 %v1020, 0.5
        %v1037 = vmul.f32 %v1021, 0.5
        %v1038 = vmul.f32 %v1022, 0.5
        %v1039 = vmul.f32 %v1023, 0.5
        %v1040 = vmul.f32 %v1024, 0.5
        %v1041 = vmul.f32 %v1025, 0.5
        %v1042 = vmul.f32 %v1026, 1.1
        %v1043 = vmul.f32 %v1027, 1.1
        %v1044 = vmul.f32 %v1028, 1.1
        %v1045 = vmul.f32 %v1029, 1.1
        %v1046 = vmul.f32 %v1030, 1.1
        %v1047 = vmul.f32 %v1031, 1.1
        %v1048 = vmul.f32 %v1032, 1.1
        %v1049 = vmul.f32 %v1033, 1.1
        %v1050 = vmul.f32 %v1034, 1.1
        %v1051 = vmul.f32 %v1035, 1.1
        %v1052 = vmul.f32 %v1036, 1.1
        %v1053 = vmul.f32 %v1037, 1.1
        %v1054 = vmul.f32 %v1038, 1.1
        %v1055 = vmul.f32 %v1039, 1.1
        %v1056 = vmul.f32 %v1040, 1.1
        %v1057 = vmul.f32 %v1041, 1.1
        %v1058 = vsel %vm962, %v1042, 0.2
        %v1059 = vsel %vm963, %v1043, 0.2
        %v1060 = vsel %vm964, %v1044, 0.2
        %v1061 = vsel %vm965, %v1045, 0.2
        %v1062 = vsel %vm966, %v1046, 0.2
        %v1063 = vsel %vm967, %v1047, 0.2
        %v1064 = vsel %vm968, %v1048, 0.2
        %v1065 = vsel %vm969, %v1049, 0.2
        %v1066 = vsel %vm970, %v1050, 0.2
        %v1067 = vsel %vm971, %v1051, 0.2
        %v1068 = vsel %vm972, %v1052, 0.2
        %v1069 = vsel %vm973, %v1053, 0.2
        %v1070 = vsel %vm974, %v1054, 0.2
        %v1071 = vsel %vm975, %v1055, 0.2
        %v1072 = vsel %vm976, %v1056, 0.2
        %v1073 = vsel %vm977, %v1057, 0.2
        %v1074 = vsub.f32 %v1058, %v546
        %v1075 = vsub.f32 %v1059, %v551
        %v1076 = vsub.f32 %v1060, %v556
        %v1077 = vsub.f32 %v1061, %v561
        %v1078 = vsub.f32 %v1062, %v566
        %v1079 = vsub.f32 %v1063, %v571
        %v1080 = vsub.f32 %v1064, %v576
        %v1081 = vsub.f32 %v1065, %v581
        %v1082 = vsub.f32 %v1066, %v586
        %v1083 = vsub.f32 %v1067, %v591
        %v1084 = vsub.f32 %v1068, %v596
        %v1085 = vsub.f32 %v1069, %v601
        %v1086 = vsub.f32 %v1070, %v606
        %v1087 = vsub.f32 %v1071, %v611
        %v1088 = vsub.f32 %v1072, %v616
        %v1089 = vsub.f32 %v1073, %v621
        %v1090 = vld [vmem:[%s428] sm:$0xff]
        %v1091 = vld [vmem:[%s428 + $0x8] sm:$0xff]
        %v1092 = vld [vmem:[%s428 + $0x10] sm:$0xff]
        %v1093 = vld [vmem:[%s428 + $0x18] sm:$0xff]
        %v1094 = vld [vmem:[%s428 + $0x20] sm:$0xff]
        %v1095 = vld [vmem:[%s428 + $0x28] sm:$0xff]
        %v1096 = vld [vmem:[%s428 + $0x30] sm:$0xff]
        %v1097 = vld [vmem:[%s428 + $0x38] sm:$0xff]
        %v1098 = vld [vmem:[%s428 + $0x40] sm:$0xff]
        %v1099 = vld [vmem:[%s428 + $0x48] sm:$0xff]
        %v1100 = vld [vmem:[%s428 + $0x50] sm:$0xff]
        %v1101 = vld [vmem:[%s428 + $0x58] sm:$0xff]
        %v1102 = vld [vmem:[%s428 + $0x60] sm:$0xff]
        %v1103 = vld [vmem:[%s428 + $0x68] sm:$0xff]
        %v1104 = vld [vmem:[%s428 + $0x70] sm:$0xff]
        %v1105 = vld [vmem:[%s428 + $0x78] sm:$0xff]
        %1106 = vxpose.xlu0.b32.start [1/16] %v1090, 128
        %1107 = vxpose.xlu0.b32.cont [2/16] %v1091, 128
        %1108 = vxpose.xlu0.b32.cont [3/16] %v1092, 128
        %1109 = vxpose.xlu0.b32.cont [4/16] %v1093, 128
        %1110 = vxpose.xlu0.b32.cont [5/16] %v1094, 128
        %1111 = vxpose.xlu0.b32.cont [6/16] %v1095, 128
        %1112 = vxpose.xlu0.b32.cont [7/16] %v1096, 128
        %1113 = vxpose.xlu0.b32.cont [8/16] %v1097, 128
        %1114 = vxpose.xlu0.b32.cont [9/16] %v1098, 128
        %1115 = vxpose.xlu0.b32.cont [10/16] %v1099, 128
        %1116 = vxpose.xlu0.b32.cont [11/16] %v1100, 128
        %1117 = vxpose.xlu0.b32.cont [12/16] %v1101, 128
        %1118 = vxpose.xlu0.b32.cont [13/16] %v1102, 128
        %1119 = vxpose.xlu0.b32.cont [14/16] %v1103, 128
        %1120 = vxpose.xlu0.b32.cont [15/16] %v1104, 128
        %1121 = vxpose.xlu0.b32.end [16/16] %v1105, 128
        %v1122 = vpop.trf.xlu0
        %v1123 = vpop.trf.xlu0
        %v1124 = vpop.trf.xlu0
        %v1125 = vpop.trf.xlu0
        %v1126 = vpop.trf.xlu0
        %v1127 = vpop.trf.xlu0
        %v1128 = vpop.trf.xlu0
        %v1129 = vpop.trf.xlu0
        %v1130 = vpop.trf.xlu0
        %v1131 = vpop.trf.xlu0
        %v1132 = vpop.trf.xlu0
        %v1133 = vpop.trf.xlu0
        %v1134 = vpop.trf.xlu0
        %v1135 = vpop.trf.xlu0
        %v1136 = vpop.trf.xlu0
        %v1137 = vpop.trf.xlu0
        %v1138 = vmul.f32 %v1122, 0.5
        %v1139 = vmul.f32 %v1123, 0.5
        %v1140 = vmul.f32 %v1124, 0.5
        %v1141 = vmul.f32 %v1125, 0.5
        %v1142 = vmul.f32 %v1126, 0.5
        %v1143 = vmul.f32 %v1127, 0.5
        %v1144 = vmul.f32 %v1128, 0.5
        %v1145 = vmul.f32 %v1129, 0.5
        %v1146 = vmul.f32 %v1130, 0.5
        %v1147 = vmul.f32 %v1131, 0.5
        %v1148 = vmul.f32 %v1132, 0.5
        %v1149 = vmul.f32 %v1133, 0.5
        %v1150 = vmul.f32 %v1134, 0.5
        %v1151 = vmul.f32 %v1135, 0.5
        %v1152 = vmul.f32 %v1136, 0.5
        %v1153 = vmul.f32 %v1137, 0.5
        %v1154 = vtanh.pop %v1138
        %v1155 = vtanh.pop %v1139
        %v1156 = vtanh.pop %v1140
        %v1157 = vtanh.pop %v1141
        %v1158 = vtanh.pop %v1142
        %v1159 = vtanh.pop %v1143
        %v1160 = vtanh.pop %v1144
        %v1161 = vtanh.pop %v1145
        %v1162 = vtanh.pop %v1146
        %v1163 = vtanh.pop %v1147
        %v1164 = vtanh.pop %v1148
        %v1165 = vtanh.pop %v1149
        %v1166 = vtanh.pop %v1150
        %v1167 = vtanh.pop %v1151
        %v1168 = vtanh.pop %v1152
        %v1169 = vtanh.pop %v1153
        %v1170 = vadd.f32 %v1154, 1.0
        %v1171 = vadd.f32 %v1155, 1.0
        %v1172 = vadd.f32 %v1156, 1.0
        %v1173 = vadd.f32 %v1157, 1.0
        %v1174 = vadd.f32 %v1158, 1.0
        %v1175 = vadd.f32 %v1159, 1.0
        %v1176 = vadd.f32 %v1160, 1.0
        %v1177 = vadd.f32 %v1161, 1.0
        %v1178 = vadd.f32 %v1162, 1.0
        %v1179 = vadd.f32 %v1163, 1.0
        %v1180 = vadd.f32 %v1164, 1.0
        %v1181 = vadd.f32 %v1165, 1.0
        %v1182 = vadd.f32 %v1166, 1.0
        %v1183 = vadd.f32 %v1167, 1.0
        %v1184 = vadd.f32 %v1168, 1.0
        %v1185 = vadd.f32 %v1169, 1.0
        %v1186 = vmul.f32 %v1170, 0.5
        %v1187 = vmul.f32 %v1171, 0.5
        %v1188 = vmul.f32 %v1172, 0.5
        %v1189 = vmul.f32 %v1173, 0.5
        %v1190 = vmul.f32 %v1174, 0.5
        %v1191 = vmul.f32 %v1175, 0.5
        %v1192 = vmul.f32 %v1176, 0.5
        %v1193 = vmul.f32 %v1177, 0.5
        %v1194 = vmul.f32 %v1178, 0.5
        %v1195 = vmul.f32 %v1179, 0.5
        %v1196 = vmul.f32 %v1180, 0.5
        %v1197 = vmul.f32 %v1181, 0.5
        %v1198 = vmul.f32 %v1182, 0.5
        %v1199 = vmul.f32 %v1183, 0.5
        %v1200 = vmul.f32 %v1184, 0.5
        %v1201 = vmul.f32 %v1185, 0.5
        %v1202 = vmul.f32 %v1186, %v1074
        %v1203 = vmul.f32 %v1187, %v1075
        %v1204 = vmul.f32 %v1188, %v1076
        %v1205 = vmul.f32 %v1189, %v1077
        %v1206 = vmul.f32 %v1190, %v1078
        %v1207 = vmul.f32 %v1191, %v1079
        %v1208 = vmul.f32 %v1192, %v1080
        %v1209 = vmul.f32 %v1193, %v1081
        %v1210 = vmul.f32 %v1194, %v1082
        %v1211 = vmul.f32 %v1195, %v1083
        %v1212 = vmul.f32 %v1196, %v1084
        %v1213 = vmul.f32 %v1197, %v1085
        %v1214 = vmul.f32 %v1198, %v1086
        %v1215 = vmul.f32 %v1199, %v1087
        %v1216 = vmul.f32 %v1200, %v1088
        %v1217 = vmul.f32 %v1201, %v1089
        %v1218 = vadd.f32 %v850, %v1202
        %v1219 = vadd.f32 %v851, %v1203
        %v1220 = vadd.f32 %v852, %v1204
        %v1221 = vadd.f32 %v853, %v1205
        %v1222 = vadd.f32 %v854, %v1206
        %v1223 = vadd.f32 %v855, %v1207
        %v1224 = vadd.f32 %v856, %v1208
        %v1225 = vadd.f32 %v857, %v1209
        %v1226 = vadd.f32 %v858, %v1210
        %v1227 = vadd.f32 %v859, %v1211
        %v1228 = vadd.f32 %v860, %v1212
        %v1229 = vadd.f32 %v861, %v1213
        %v1230 = vadd.f32 %v862, %v1214
        %v1231 = vadd.f32 %v863, %v1215
        %v1232 = vadd.f32 %v864, %v1216
        %v1233 = vadd.f32 %v865, %v1217
        %1234 = vst [vmem:[%s487] sm:$0xff] %v1218
        %1235 = vst [vmem:[%s487 + $0x8] sm:$0xff] %v1219
        %1236 = vst [vmem:[%s487 + $0x10] sm:$0xff] %v1220
        %1237 = vst [vmem:[%s487 + $0x18] sm:$0xff] %v1221
        %1238 = vst [vmem:[%s487 + $0x20] sm:$0xff] %v1222
        %1239 = vst [vmem:[%s487 + $0x28] sm:$0xff] %v1223
        %1240 = vst [vmem:[%s487 + $0x30] sm:$0xff] %v1224
        %1241 = vst [vmem:[%s487 + $0x38] sm:$0xff] %v1225
        %1242 = vst [vmem:[%s487 + $0x40] sm:$0xff] %v1226
        %1243 = vst [vmem:[%s487 + $0x48] sm:$0xff] %v1227
        %1244 = vst [vmem:[%s487 + $0x50] sm:$0xff] %v1228
        %1245 = vst [vmem:[%s487 + $0x58] sm:$0xff] %v1229
        %1246 = vst [vmem:[%s487 + $0x60] sm:$0xff] %v1230
        %1247 = vst [vmem:[%s487 + $0x68] sm:$0xff] %v1231
        %1248 = vst [vmem:[%s487 + $0x70] sm:$0xff] %v1232
        %1249 = vst [vmem:[%s487 + $0x78] sm:$0xff] %v1233
        %s1250 = sand.u32 %s208, 1
        %s1251 = scalar_lea.sflag [#allocation5], %s1250
        %s1252 = sand.u32 %s208, 1
        %s1253 = smul.addr %s1252, 128
        %s1254 = scalar_lea.vmem [#allocation8], %s1253
        // Predicated region
        $region91: #{tpu_custom_call.1} parent=77 // pred_check
          %p1255 = pneg %p218
        $region92: #{tpu_custom_call.1} parent=77 // pred_check_branch
          %1257 = sbr.rel (%p1255) target = $region94
        $region93: #{tpu_custom_call.1} parent=77 // pred_region
          %s1258 = smul.u32 16, %s30
          %1260 = vsyncadd %s1251, 0
          %s1261 = smul.addr %s1258, 2
          %s1262 = sadd.s32 %s31, %s1261
          %s1263 = smul.addr %s1262, 8
          %s1264 = scalar_lea.hbm %s6, %s1263
          %s1265 = sshll.u32 %s1254, 4
          %s1266 = int_to_ptr.vmem [resolvable:$true] %s1265
          %s1267 = sshll.u32 %s1264, 4
          %s1268 = int_to_ptr.hbm [resolvable:$true] %s1267
          %1273 = dma.vmem_to_hbm [thread:$0]  %s1266, 2048, %s1268, %s1251, 128, 256, 8
        $region94: #{tpu_custom_call.1} parent=77 // pred_fallthru
          _
      $region78: #{tpu_custom_call.1} parent=5 // pred_fallthru
        _
      %p1274 = scmp.le.s32.totalorder 2, %s21
      // Predicated region
      $region95: #{tpu_custom_call.1} parent=5 // pred_check
        %p1275 = pneg %p1274
      $region96: #{tpu_custom_call.1} parent=5 // pred_check_branch
        %1277 = sbr.rel (%p1275) target = $region98
      $region97: #{tpu_custom_call.1} parent=5 // pred_region
        %s1278 = ssub.s32 %s21, 2
        // Predicated region
        $region99: #{tpu_custom_call.1} parent=97 // pred_check
          %p1279 = pneg %p224
        $region100: #{tpu_custom_call.1} parent=97 // pred_check_branch
          %1281 = sbr.rel (%p1279) target = $region102
        $region101: #{tpu_custom_call.1} parent=97 // pred_region
          %s1282 = sand.u32 %s209, 1
          %s1283 = scalar_lea.sflag [#allocation5], %s1282
          %s1284 = sand.u32 %s209, 1
          %s1285 = smul.addr %s1284, 128
          %s1286 = scalar_lea.vmem [#allocation8], %s1285
          %1288 = dma.done %s1283, 2048
        $region102: #{tpu_custom_call.1} parent=97 // pred_fallthru
          _
      $region98: #{tpu_custom_call.1} parent=5 // pred_fallthru
        _
    $region6: #{tpu_custom_call.1} parent=1 // loop_footer
      %s25 = sadd.s32 1, %s21
    $region7: #{tpu_custom_call.1} parent=1 // loop_footer_branch
      %20 = sbr.rel target = $region3
    $region8: #{tpu_custom_call.1} parent=1 // loop_exit
      _
    %1289 = vsyncpa [#allocation4], 1
    %s1290 = scalar_lea.sflag [#allocation4], 1
    %1291 = vsyncpa %s1290, 1
    %1292 = vsyncpa [#allocation7], 1
    %s1293 = scalar_lea.sflag [#allocation7], 1
    %1294 = vsyncpa %s1293, 1
    %1295 = vsyncpa [#allocation5], 1
    %s1296 = scalar_lea.sflag [#allocation5], 1
    %1297 = vsyncpa %s1296, 1

</llo_original>
